<compile_context>
chip_gen: v7x
topology: tpu7x:2x2x1
jax: 0.10.0
libtpu: 0.0.40
codegen_flags: <defaults>
</compile_context>

<pallas_src>
import functools

import jax
import jax.numpy as jnp
from jax.experimental import pallas as pl
from jax.experimental.pallas import tpu as pltpu

BN_EPS = 1e-5


def _round_up(v, m):
    return (v + m - 1) // m * m


# ------------------------- generation-aware VMEM budget -------------------------

_VMEM_CAP_CACHE = []


def _vmem_capacity_bytes():
    if not _VMEM_CAP_CACHE:
        try:
            cap = int(pltpu.get_tpu_info().vmem_capacity_bytes)
        except Exception:
            cap = 64 * 1024 * 1024          # conservative (v7x per-TC) fallback
        _VMEM_CAP_CACHE.append(cap)
    return _VMEM_CAP_CACHE[0]


def _vmem_limit_bytes():
    cap = _vmem_capacity_bytes()
    # ~48 MiB on v7x (64 MiB/TC), ~96 MiB on v5e/v6e (128 MiB).
    return max(32 * 1024 * 1024, min(cap * 3 // 4, cap - 8 * 1024 * 1024))


# ----------------------------- fused one-shot path ------------------------------
# Whole problem resident in VMEM, no grid, no pipeline double-buffers.

def _fused_kernel(x_ref, w_ref, b_ref, g_ref, bt_ref, o_ref, *, compute_dtype):
    x = x_ref[...]
    if compute_dtype is not None:
        x = x.astype(compute_dtype)           # in-kernel cast (bf16 MXU inputs)
    h = jnp.dot(x, w_ref[...], preferred_element_type=jnp.float32) + b_ref[...]
    n = h.shape[0]
    mean = jnp.sum(h, axis=0, keepdims=True) * (1.0 / n)
    diff = h - mean
    var = jnp.sum(diff * diff, axis=0, keepdims=True) * (1.0 / n)   # biased
    inv = jax.lax.rsqrt(var + BN_EPS)
    o_ref[...] = (diff * (g_ref[...] * inv) + bt_ref[...]).astype(o_ref.dtype)


def _linear_bn_fused(x, w, b, gamma, beta, compute_dtype, vmem_limit):
    N, K = x.shape
    _, D = w.shape
    xsz = jnp.dtype(x.dtype).itemsize
    wsz = jnp.dtype(w.dtype).itemsize
    cost = pl.CostEstimate(
        flops=int(2 * N * K * D + 6 * N * D),
        transcendentals=int(D),
        bytes_accessed=int(xsz * N * K + wsz * K * D + 4 * (N * D + 3 * D)),
    )
    vmem_spec = pl.BlockSpec(memory_space=pltpu.MemorySpace.VMEM)
    return pl.pallas_call(
        functools.partial(_fused_kernel, compute_dtype=compute_dtype),
        out_shape=jax.ShapeDtypeStruct((N, D), jnp.float32),
        in_specs=[vmem_spec] * 5,
        out_specs=vmem_spec,
        compiler_params=pltpu.CompilerParams(vmem_limit_bytes=vmem_limit),
        cost_estimate=cost,
    )(x, w, b, gamma, beta)


# ------------------------ middle path: VMEM-resident h --------------------------
# grid = (2, n_tiles): phase 0 streams x, writes h into a VMEM scratch and
# accumulates column sum / sum-of-squares; phase 1 normalizes from the scratch.
# h never touches HBM.  Phase/tile axes are sequential ("arbitrary") because of
# the cross-phase dependence through the scratch.

def _middle_kernel(x_ref, w_ref, b_ref, g_ref, bt_ref, o_ref,
                   h_scr, sum_scr, sumsq_scr, scale_scr, shift_scr,
                   *, tn, n_rows, n_pad, compute_dtype):
    p = pl.program_id(0)          # phase
    i = pl.program_id(1)          # N tile
    n_tiles = pl.num_programs(1)
    start = pl.multiple_of(i * tn, tn)

    @pl.when(p == 0)
    def _phase0():
        @pl.when(i == 0)
        def _():
            sum_scr[...] = jnp.zeros_like(sum_scr)
            sumsq_scr[...] = jnp.zeros_like(sumsq_scr)

        xb = x_ref[...]
        if compute_dtype is not None:
            xb = xb.astype(compute_dtype)          # in-kernel bf16 cast
        h = jnp.dot(xb, w_ref[...], preferred_element_type=jnp.float32)
        h = h + b_ref[...]
        h_scr[pl.ds(start, tn), :] = h
        sum_scr[...] += jnp.sum(h, axis=0, keepdims=True)
        sumsq_scr[...] += jnp.sum(h * h, axis=0, keepdims=True)

        @pl.when(i == n_tiles - 1)
        def _():
            # Padded x rows are exactly zero, so each padded row contributes
            # b to the column sum and b*b to the sum of squares: correct
            # analytically instead of masking every tile.
            pad_rows = jnp.float32(n_pad - n_rows)
            bb = b_ref[...]
            s = sum_scr[...] - pad_rows * bb
            ss = sumsq_scr[...] - pad_rows * bb * bb
            mean = s * (1.0 / n_rows)
            var = jnp.maximum(ss * (1.0 / n_rows) - mean * mean, 0.0)  # biased
            inv = jax.lax.rsqrt(var + BN_EPS)
            scale = g_ref[...] * inv
            scale_scr[...] = scale
            shift_scr[...] = bt_ref[...] - mean * scale

    @pl.when(p == 1)
    def _phase1():
        h = h_scr[pl.ds(start, tn), :]
        o_ref[...] = (h * scale_scr[...] + shift_scr[...]).astype(o_ref.dtype)


def _linear_bn_middle(x, w, b, gamma, beta, compute_dtype, tn, n_rows, vmem_limit):
    n_pad, Kp = x.shape
    _, D = w.shape
    n_tiles = n_pad // tn
    xsz = jnp.dtype(x.dtype).itemsize
    wsz = jnp.dtype(w.dtype).itemsize

    cost = pl.CostEstimate(
        flops=int(2 * n_pad * Kp * D + 8 * n_pad * D),
        transcendentals=int(D),
        bytes_accessed=int(xsz * n_pad * Kp + wsz * Kp * D + 4 * (n_pad * D + 3 * D)),
    )
    # x: stream tiles in phase 0; in phase 1 keep the last block index so no
    # re-fetch happens.  Output block stays resident (index 0) through phase 0
    # and is only written back during phase 1.
    x_map = lambda p, i: (i * (1 - p) + p * (n_tiles - 1), 0)
    const_map = lambda p, i: (0, 0)

    return pl.pallas_call(
        functools.partial(_middle_kernel, tn=tn, n_rows=n_rows, n_pad=n_pad,
                          compute_dtype=compute_dtype),
        out_shape=jax.ShapeDtypeStruct((n_pad, D), jnp.float32),
        grid=(2, n_tiles),
        in_specs=[
            pl.BlockSpec((tn, Kp), x_map),
            pl.BlockSpec((Kp, D), const_map),   # W stays VMEM resident
            pl.BlockSpec((1, D), const_map),    # bias
            pl.BlockSpec((1, D), const_map),    # gamma
            pl.BlockSpec((1, D), const_map),    # beta
        ],
        out_specs=pl.BlockSpec((tn, D), lambda p, i: (i * p, 0)),
        scratch_shapes=[
            pltpu.VMEM((n_pad, D), jnp.float32),   # resident h
            pltpu.VMEM((1, D), jnp.float32),       # column sum
            pltpu.VMEM((1, D), jnp.float32),       # column sum of squares
            pltpu.VMEM((1, D), jnp.float32),       # folded scale  (gamma*inv)
            pltpu.VMEM((1, D), jnp.float32),       # folded shift  (beta-mean*scale)
        ],
        compiler_params=pltpu.CompilerParams(
            dimension_semantics=("arbitrary", "arbitrary"),
            vmem_limit_bytes=vmem_limit,
        ),
        cost_estimate=cost,
    )(x, w, b, gamma, beta)


# -------------------- large fallback: two-pass recompute ------------------------
# When h cannot be VMEM resident: pass 1 computes only scale/shift (no h write
# to HBM), pass 2 re-streams x, recomputes h and normalizes ("parallel" grid).

def _stats_kernel(x_ref, w_ref, b_ref, g_ref, bt_ref, coef_ref,
                  sum_scr, sumsq_scr, *, n_rows, n_pad, compute_dtype):
    i = pl.program_id(0)

    @pl.when(i == 0)
    def _():
        sum_scr[...] = jnp.zeros_like(sum_scr)
        sumsq_scr[...] = jnp.zeros_like(sumsq_scr)

    xb = x_ref[...]
    if compute_dtype is not None:
        xb = xb.astype(compute_dtype)
    h = jnp.dot(xb, w_ref[...], preferred_element_type=jnp.float32) + b_ref[...]
    sum_scr[...] += jnp.sum(h, axis=0, keepdims=True)
    sumsq_scr[...] += jnp.sum(h * h, axis=0, keepdims=True)

    @pl.when(i == pl.num_programs(0) - 1)
    def _():
        pad_rows = jnp.float32(n_pad - n_rows)
        bb = b_ref[...]
        s = sum_scr[...] - pad_rows * bb
        ss = sumsq_scr[...] - pad_rows * bb * bb
        mean = s * (1.0 / n_rows)
        var = jnp.maximum(ss * (1.0 / n_rows) - mean * mean, 0.0)
        inv = jax.lax.rsqrt(var + BN_EPS)
        scale = g_ref[...] * inv
        coef_ref[0:1, :] = scale
        coef_ref[1:2, :] = bt_ref[...] - mean * scale


def _apply_kernel(x_ref, w_ref, b_ref, coef_ref, o_ref, *, compute_dtype):
    xb = x_ref[...]
    if compute_dtype is not None:
        xb = xb.astype(compute_dtype)
    h = jnp.dot(xb, w_ref[...], preferred_element_type=jnp.float32) + b_ref[...]
    o_ref[...] = (h * coef_ref[0:1, :] + coef_ref[1:2, :]).astype(o_ref.dtype)


def _linear_bn_large(x, w, b, gamma, beta, compute_dtype, tn, n_rows, vmem_limit):
    n_pad, Kp = x.shape
    _, D = w.shape
    n_tiles = n_pad // tn
    xsz = jnp.dtype(x.dtype).itemsize
    wsz = jnp.dtype(w.dtype).itemsize

    cost1 = pl.CostEstimate(
        flops=int(2 * n_pad * Kp * D + 4 * n_pad * D),
        transcendentals=int(D),
        bytes_accessed=int(xsz * n_pad * Kp + wsz * Kp * D + 4 * 5 * D),
    )
    coef = pl.pallas_call(
        functools.partial(_stats_kernel, n_rows=n_rows, n_pad=n_pad,
                          compute_dtype=compute_dtype),
        out_shape=jax.ShapeDtypeStruct((2, D), jnp.float32),
        grid=(n_tiles,),
        in_specs=[
            pl.BlockSpec((tn, Kp), lambda i: (i, 0)),
            pl.BlockSpec((Kp, D), lambda i: (0, 0)),
            pl.BlockSpec((1, D), lambda i: (0, 0)),
            pl.BlockSpec((1, D), lambda i: (0, 0)),
            pl.BlockSpec((1, D), lambda i: (0, 0)),
        ],
        out_specs=pl.BlockSpec((2, D), lambda i: (0, 0)),
        scratch_shapes=[pltpu.VMEM((1, D), jnp.float32),
                        pltpu.VMEM((1, D), jnp.float32)],
        compiler_params=pltpu.CompilerParams(
            dimension_semantics=("arbitrary",),
            vmem_limit_bytes=vmem_limit,
        ),
        cost_estimate=cost1,
    )(x, w, b, gamma, beta)

    cost2 = pl.CostEstimate(
        flops=int(2 * n_pad * Kp * D + 4 * n_pad * D),
        transcendentals=0,
        bytes_accessed=int(xsz * n_pad * Kp + wsz * Kp * D + 4 * (n_pad * D + 3 * D)),
    )
    y = pl.pallas_call(
        functools.partial(_apply_kernel, compute_dtype=compute_dtype),
        out_shape=jax.ShapeDtypeStruct((n_pad, D), jnp.float32),
        grid=(n_tiles,),
        in_specs=[
            pl.BlockSpec((tn, Kp), lambda i: (i, 0)),
            pl.BlockSpec((Kp, D), lambda i: (0, 0)),
            pl.BlockSpec((1, D), lambda i: (0, 0)),
            pl.BlockSpec((2, D), lambda i: (0, 0)),
        ],
        out_specs=pl.BlockSpec((tn, D), lambda i: (i, 0)),
        compiler_params=pltpu.CompilerParams(
            dimension_semantics=("parallel",),       # independent tiles -> megacore
            vmem_limit_bytes=vmem_limit,
        ),
        cost_estimate=cost2,
    )(x, w, b, coef)
    return y


# ---------------------------------- dispatcher -----------------------------------

@functools.partial(jax.jit, static_argnames=("matmul_dtype", "force_path", "tn"))
def linear_bn(x, w, b, gamma, beta, *, matmul_dtype=jnp.bfloat16,
              force_path=None, tn=1024):
    """BN_train(x @ W + b).  x:[N,K], w:[K,D], b/gamma/beta:[1,D].  Returns f32.

    matmul_dtype: MXU input dtype (default bf16; None -> use x/w dtypes).
                  Accumulation and BN statistics are always f32.
    force_path:   None (auto) | "fused" | "middle" | "large".
    """
    N, K = x.shape
    Kw, D = w.shape
    assert K == Kw
    cdt = matmul_dtype
    vmem_limit = _vmem_limit_bytes()

    w_c = w if cdt is None else w.astype(cdt)     # W is tiny: cast once in wrapper
    xsz = jnp.dtype(x.dtype).itemsize
    wsz = jnp.dtype(w_c.dtype).itemsize

    # -------- fused (whole problem VMEM resident, no grid) --------
    # 3*N*D covers output + in-kernel f32 h/diff temporaries.
    fused_bytes = xsz * N * K + wsz * K * D + 4 * (3 * N * D + 4 * D)
    path = force_path
    if path == "fused" or (path is None and fused_bytes <= vmem_limit // 2):
        return _linear_bn_fused(x, w_c, b, gamma, beta, cdt, vmem_limit)

    # -------- tiled paths: pad rows (and K -> x128 when bf16) --------
    tn_eff = min(_round_up(tn, 128), _round_up(N, 128))
    n_pad = _round_up(N, tn_eff)
    Kp = _round_up(K, 128) if (cdt is not None and K % 128 != 0) else K
    pad_rows, pad_cols = n_pad - N, Kp - K

    x_t = x
    if pad_rows or pad_cols:
        x_t = jnp.pad(x_t, ((0, pad_rows), (0, pad_cols)))
    if pad_cols:
        # Fold the bf16 cast into the same wrapper pass as the K padding.
        x_t = x_t.astype(cdt)
        w_c = jnp.pad(w, ((0, pad_cols), (0, 0))).astype(cdt)
    xsz_t = jnp.dtype(x_t.dtype).itemsize

    if path is None:
        mid_bytes = (4 * n_pad * D                 # resident h scratch
                     + 2 * xsz_t * tn_eff * Kp     # x double buffer
                     + 2 * 4 * tn_eff * D          # y double buffer
                     + wsz * Kp * D + 64 * D)
        path = "middle" if mid_bytes <= vmem_limit - (4 << 20) else "large"

    if path == "middle":
        y = _linear_bn_middle(x_t, w_c, b, gamma, beta, cdt, tn_eff, N, vmem_limit)
    else:
        y = _linear_bn_large(x_t, w_c, b, gamma, beta, cdt, tn_eff, N, vmem_limit)
    return y[:N] if n_pad != N else y


# ------------------------------- parameter setup ---------------------------------

def init_linear_bn_params(key, d_in, d_out):
    """Linear (uniform +/- 1/sqrt(d_in)) + BN (gamma=1, beta=0)."""
    kw, kb = jax.random.split(key)
    bound = 1.0 / jnp.sqrt(d_in)
    w = jax.random.uniform(kw, (d_in, d_out), jnp.float32, -bound, bound)
    b = jax.random.uniform(kb, (1, d_out), jnp.float32, -bound, bound)
    gamma = jnp.ones((1, d_out), jnp.float32)
    beta = jnp.zeros((1, d_out), jnp.float32)
    return dict(w=w, b=b, gamma=gamma, beta=beta)


class FeatureEncoder:
    """JAX/Pallas equivalent of H2GB FeatureEncoder (homogeneous-graph path).

    node_encoder    : Linear(dim_in_node -> dim_inner)
    node_encoder_bn : BatchNorm1dNode(dim_inner)   (training-mode batch stats)
    edge_encoder    : Linear(dim_in_edge -> dim_edge == dim_inner)
    edge_encoder_bn : BatchNorm1dNode(dim_edge)
    """
    # TODO(synk): HeteroData / registry-driven encoder variants and eval-mode
    # (running-stat) BatchNorm are not represented; only the Linear+BN path is.
    # TODO(synk): node and edge calls could be merged into one pallas_call
    # (shared D_out) to halve dispatch overhead for tiny graphs.

    def __init__(self, dim_in_node, dim_in_edge, dim_inner, key):
        kn, ke = jax.random.split(key)
        self.node_params = init_linear_bn_params(kn, dim_in_node, dim_inner)
        self.edge_params = init_linear_bn_params(ke, dim_in_edge, dim_inner)
        self.dim_in = dim_inner

    def __call__(self, batch):
        out = dict(batch)
        p = self.node_params
        out["x"] = linear_bn(batch["x"], p["w"], p["b"], p["gamma"], p["beta"])
        p = self.edge_params
        out["edge_attr"] = linear_bn(
            batch["edge_attr"], p["w"], p["b"], p["gamma"], p["beta"]
        )
        return out


# -------------------------------------- main --------------------------------------

if __name__ == "__main__":
    key = jax.random.PRNGKey(0)
    k_x, k_e, k_params, k_big = jax.random.split(key, 4)

    num_nodes = 64
    num_edges = 128
    dim_in_node = 256   # raw node feature dim
    dim_in_edge = 128   # raw edge feature dim
    dim_inner = 128     # cfg.gnn.dim_inner

    batch = {
        "x": jax.random.normal(k_x, (num_nodes, dim_in_node), jnp.float32),
        "edge_attr": jax.random.normal(k_e, (num_edges, dim_in_edge), jnp.float32),
    }

    # Pure-JAX reference of fused Linear + train-mode BatchNorm1d.
    def ref(x, p):
        h = x @ p["w"] + p["b"]
        mean = h.mean(0, keepdims=True)
        var = ((h - mean) ** 2).mean(0, keepdims=True)
        return (h - mean) / jnp.sqrt(var + BN_EPS) * p["gamma"] + p["beta"]

    encoder = FeatureEncoder(dim_in_node, dim_in_edge, dim_inner, k_params)
    out = encoder(batch)                              # default: bf16 MXU, fused path
    jax.block_until_ready(out["x"])
    jax.block_until_ready(out["edge_attr"])
    assert out["x"].shape == (num_nodes, dim_inner)
    assert out["edge_attr"].shape == (num_edges, dim_inner)
    assert jnp.allclose(out["x"], ref(batch["x"], encoder.node_params),
                        atol=5e-2, rtol=5e-2)
    assert jnp.allclose(out["edge_attr"], ref(batch["edge_attr"], encoder.edge_params),
                        atol=5e-2, rtol=5e-2)

    # Tight f32 check of the small fused path.
    p = encoder.node_params
    y_f32 = linear_bn(batch["x"], p["w"], p["b"], p["gamma"], p["beta"],
                      matmul_dtype=None)
    jax.block_until_ready(y_f32)
    assert jnp.allclose(y_f32, ref(batch["x"], encoder.node_params),
                        atol=3e-4, rtol=3e-4)

    # Bigger, non-tile-aligned problem exercising every path (row padding,
    # analytic bias correction, resident-h middle path, recompute large path).
    k_bx, k_bp = jax.random.split(k_big)
    N_big, K_big = 2000, 300
    x_big = jax.random.normal(k_bx, (N_big, K_big), jnp.float32)
    p_big = init_linear_bn_params(k_bp, K_big, dim_inner)
    y_ref = ref(x_big, p_big)

    for path in ("fused", "middle", "large"):
        y = linear_bn(x_big, p_big["w"], p_big["b"], p_big["gamma"], p_big["beta"],
                      matmul_dtype=None, force_path=path, tn=512)
        jax.block_until_ready(y)
        assert y.shape == (N_big, dim_inner)
        assert jnp.allclose(y, y_ref, atol=2e-3, rtol=2e-3), path

    # bf16 MXU inputs (default) on the tiled paths (K padded to 384 in-wrapper).
    for path in ("middle", "large"):
        y = linear_bn(x_big, p_big["w"], p_big["b"], p_big["gamma"], p_big["beta"],
                      force_path=path, tn=512)
        jax.block_until_ready(y)
        assert jnp.allclose(y, y_ref, atol=5e-2, rtol=5e-2), path

    print("KERNEL_OK")
</pallas_src>

<mosaic_0001>
module attributes {stable_mosaic.version = 11 : i64} {
  func.func @_fused_kernel(%arg0: memref<64x256xf32, #tpu.memory_space<vmem>>, %arg1: memref<256x128xbf16, #tpu.memory_space<vmem>>, %arg2: memref<1x128xf32, #tpu.memory_space<vmem>>, %arg3: memref<1x128xf32, #tpu.memory_space<vmem>>, %arg4: memref<1x128xf32, #tpu.memory_space<vmem>>, %arg5: memref<64x128xf32, #tpu.memory_space<vmem>>) attributes {dimension_semantics = [], scalar_prefetch = 0 : i64, scratch_operands = 0 : i64, tpu.core_type = #tpu.core_type<tc>} {
    %c0 = arith.constant 0 : index
    %c0_0 = arith.constant 0 : index
    %0 = vector.load %arg0[%c0, %c0_0] : memref<64x256xf32, #tpu.memory_space<vmem>>, vector<64x256xf32>
    %1 = arith.truncf %0 : vector<64x256xf32> to vector<64x256xbf16>
    %c0_1 = arith.constant 0 : index
    %c0_2 = arith.constant 0 : index
    %2 = vector.load %arg1[%c0_1, %c0_2] : memref<256x128xbf16, #tpu.memory_space<vmem>>, vector<256x128xbf16>
    %cst = arith.constant dense<0.000000e+00> : vector<64x128xf32>
    %3 = tpu.matmul %1, %2, %cst {dimension_numbers = #tpu.dot_dimension_numbers<[1], [0], [0], [1], [0, 0, 1, 1], [], []>} : vector<64x256xbf16>, vector<256x128xbf16>, vector<64x128xf32> -> vector<64x128xf32>
    %c0_3 = arith.constant 0 : index
    %c0_4 = arith.constant 0 : index
    %4 = vector.load %arg2[%c0_3, %c0_4] : memref<1x128xf32, #tpu.memory_space<vmem>>, vector<1x128xf32>
    %5 = vector.broadcast %4 : vector<1x128xf32> to vector<64x128xf32>
    %6 = arith.addf %3, %5 : vector<64x128xf32>
    %cst_5 = arith.constant dense<0.000000e+00> : vector<128xf32>
    %7 = vector.multi_reduction <add>, %6, %cst_5 [0] : vector<64x128xf32> to vector<128xf32>
    %8 = vector.shape_cast %7 : vector<128xf32> to vector<1x128xf32>
    %cst_6 = arith.constant 1.562500e-02 : f32
    %9 = vector.broadcast %cst_6 : f32 to vector<1x128xf32>
    %10 = arith.mulf %8, %9 : vector<1x128xf32>
    %11 = vector.broadcast %10 : vector<1x128xf32> to vector<64x128xf32>
    %12 = arith.subf %6, %11 : vector<64x128xf32>
    %13 = arith.mulf %12, %12 : vector<64x128xf32>
    %cst_7 = arith.constant dense<0.000000e+00> : vector<128xf32>
    %14 = vector.multi_reduction <add>, %13, %cst_7 [0] : vector<64x128xf32> to vector<128xf32>
    %15 = vector.shape_cast %14 : vector<128xf32> to vector<1x128xf32>
    %cst_8 = arith.constant 1.562500e-02 : f32
    %16 = vector.broadcast %cst_8 : f32 to vector<1x128xf32>
    %17 = arith.mulf %15, %16 : vector<1x128xf32>
    %cst_9 = arith.constant 9.99999974E-6 : f32
    %18 = vector.broadcast %cst_9 : f32 to vector<1x128xf32>
    %19 = arith.addf %17, %18 : vector<1x128xf32>
    %20 = math.rsqrt %19 : vector<1x128xf32>
    %c0_10 = arith.constant 0 : index
    %c0_11 = arith.constant 0 : index
    %21 = vector.load %arg3[%c0_10, %c0_11] : memref<1x128xf32, #tpu.memory_space<vmem>>, vector<1x128xf32>
    %22 = arith.mulf %21, %20 : vector<1x128xf32>
    %23 = vector.broadcast %22 : vector<1x128xf32> to vector<64x128xf32>
    %24 = arith.mulf %12, %23 : vector<64x128xf32>
    %c0_12 = arith.constant 0 : index
    %c0_13 = arith.constant 0 : index
    %25 = vector.load %arg4[%c0_12, %c0_13] : memref<1x128xf32, #tpu.memory_space<vmem>>, vector<1x128xf32>
    %26 = vector.broadcast %25 : vector<1x128xf32> to vector<64x128xf32>
    %27 = arith.addf %24, %26 : vector<64x128xf32>
    %c0_14 = arith.constant 0 : index
    %c0_15 = arith.constant 0 : index
    %28 = vector.load %arg5[%c0_14, %c0_15] : memref<64x128xf32, #tpu.memory_space<vmem>>, vector<64x128xf32>
    tpu.vector_store %arg5[%c0_14, %c0_15], %27 {strides = array<i32>} : memref<64x128xf32, #tpu.memory_space<vmem>>, vector<64x128xf32>,
    return
  }
}

</mosaic_0001>

<llo_original>
// kernel: linear_bn.1
$region0: #{linear_bn.1}
  #allocation0 [shape = 'u32[]', space=smem, size = 0x4, offset = 0x4, fixed_abs, tag = 'smem constant byte address 0x4 - core index']
  #allocation1 [shape = 'u32[144,128]{1,0:T(1,128)}', space=vmem, size = 0x12000, scoped, tag = 'internal scratch']
  %s0 = inlined_call_operand.vmem [shape: f32[64,256], index: 0, kind: input, shape index: {}]
  %s1 = inlined_call_operand.vmem [shape: bf16[256,128], index: 1, kind: input, shape index: {}]
  %s2 = inlined_call_operand.vmem [shape: f32[1,128], index: 2, kind: input, shape index: {}]
  %s3 = inlined_call_operand.vmem [shape: f32[1,128], index: 3, kind: input, shape index: {}]
  %s4 = inlined_call_operand.vmem [shape: f32[1,128], index: 4, kind: input, shape index: {}]
  %s5 = inlined_call_operand.hbm [shape: f32[64,128], index: 5, kind: output, shape index: {}]
  %s6 = sld [smem:[#allocation0]]
  $region30: #{linear_bn.1} parent=0
    _
  %s8 = ssub.s32 1, %s6
  %s9 = scalar_select 0, %s8, %s6
  $region1: #{linear_bn.1} parent=0
    #allocation2 [shape = 'u8[32768]{0}', space=vmem, size = 0x8000, scoped, tag = 'output window, operand 0, single buffered']
    #allocation3 [shape = 's32[1]{0}', space=sflag, size = 0x4, scoped, tag = 'scoped memory for linear_bn.1']
    %10 = vsyncpa [#allocation3], 0
    // Predicated region
    $region2: #{linear_bn.1} parent=1 // pred_check
      _
    $region3: #{linear_bn.1} parent=1 // pred_check_branch
      %12 = sbr.rel (0) target = $region5
    $region4: #{linear_bn.1} parent=1 // pred_region
      _
    $region5: #{linear_bn.1} parent=1 // pred_fallthru
      _
    // Predicated region
    $region6: #{linear_bn.1} parent=1 // pred_check
      _
    $region7: #{linear_bn.1} parent=1 // pred_check_branch
      %14 = sbr.rel (0) target = $region9
    $region8: #{linear_bn.1} parent=1 // pred_region
      _
    $region9: #{linear_bn.1} parent=1 // pred_fallthru
      _
    // Predicated region
    $region10: #{linear_bn.1} parent=1 // pred_check
      _
    $region11: #{linear_bn.1} parent=1 // pred_check_branch
      %16 = sbr.rel (0) target = $region13
    $region12: #{linear_bn.1} parent=1 // pred_region
      _
    $region13: #{linear_bn.1} parent=1 // pred_fallthru
      _
    // Predicated region
    $region14: #{linear_bn.1} parent=1 // pred_check
      _
    $region15: #{linear_bn.1} parent=1 // pred_check_branch
      %18 = sbr.rel (0) target = $region17
    $region16: #{linear_bn.1} parent=1 // pred_region
      _
    $region17: #{linear_bn.1} parent=1 // pred_fallthru
      _
    // Predicated region
    $region18: #{linear_bn.1} parent=1 // pred_check
      _
    $region19: #{linear_bn.1} parent=1 // pred_check_branch
      %20 = sbr.rel (0) target = $region21
    $region20: #{linear_bn.1} parent=1 // pred_region
      _
    $region21: #{linear_bn.1} parent=1 // pred_fallthru
      _
    %v22 = vld [vmem:[%s0] sm:$0xff]
    %v23 = vld [vmem:[%s0 + $0x8] sm:$0xff]
    %v24 = vld [vmem:[%s0 + $0x10] sm:$0xff]
    %v25 = vld [vmem:[%s0 + $0x18] sm:$0xff]
    %v26 = vld [vmem:[%s0 + $0x20] sm:$0xff]
    %v27 = vld [vmem:[%s0 + $0x28] sm:$0xff]
    %v28 = vld [vmem:[%s0 + $0x30] sm:$0xff]
    %v29 = vld [vmem:[%s0 + $0x38] sm:$0xff]
    %v30 = vld [vmem:[%s0 + $0x40] sm:$0xff]
    %v31 = vld [vmem:[%s0 + $0x48] sm:$0xff]
    %v32 = vld [vmem:[%s0 + $0x50] sm:$0xff]
    %v33 = vld [vmem:[%s0 + $0x58] sm:$0xff]
    %v34 = vld [vmem:[%s0 + $0x60] sm:$0xff]
    %v35 = vld [vmem:[%s0 + $0x68] sm:$0xff]
    %v36 = vld [vmem:[%s0 + $0x70] sm:$0xff]
    %v37 = vld [vmem:[%s0 + $0x78] sm:$0xff]
    %v38 = vpack.c.bf16 %v24, %v22
    %v39 = vpack.c.bf16 %v25, %v23
    %v40 = vpack.c.bf16 %v28, %v26
    %v41 = vpack.c.bf16 %v29, %v27
    %v42 = vpack.c.bf16 %v32, %v30
    %v43 = vpack.c.bf16 %v33, %v31
    %v44 = vpack.c.bf16 %v36, %v34
    %v45 = vpack.c.bf16 %v37, %v35
    %v46 = vld [vmem:[%s1] sm:$0xf]
    %v47 = vld [vmem:[%s1 + $0x4] sm:$0xf]
    %v48 = vld [vmem:[%s1 + $0x8] sm:$0xf]
    %v49 = vld [vmem:[%s1 + $0xc] sm:$0xf]
    %v50 = vld [vmem:[%s1 + $0x10] sm:$0xf]
    %v51 = vld [vmem:[%s1 + $0x14] sm:$0xf]
    %v52 = vld [vmem:[%s1 + $0x18] sm:$0xf]
    %v53 = vld [vmem:[%s1 + $0x1c] sm:$0xf]
    %v54 = vld [vmem:[%s1 + $0x20] sm:$0xf]
    %v55 = vld [vmem:[%s1 + $0x24] sm:$0xf]
    %v56 = vld [vmem:[%s1 + $0x28] sm:$0xf]
    %v57 = vld [vmem:[%s1 + $0x2c] sm:$0xf]
    %v58 = vld [vmem:[%s1 + $0x30] sm:$0xf]
    %v59 = vld [vmem:[%s1 + $0x34] sm:$0xf]
    %v60 = vld [vmem:[%s1 + $0x38] sm:$0xf]
    %v61 = vld [vmem:[%s1 + $0x3c] sm:$0xf]
    %v62 = vld [vmem:[%s1 + $0x40] sm:$0xf]
    %v63 = vld [vmem:[%s1 + $0x44] sm:$0xf]
    %v64 = vld [vmem:[%s1 + $0x48] sm:$0xf]
    %v65 = vld [vmem:[%s1 + $0x4c] sm:$0xf]
    %v66 = vld [vmem:[%s1 + $0x50] sm:$0xf]
    %v67 = vld [vmem:[%s1 + $0x54] sm:$0xf]
    %v68 = vld [vmem:[%s1 + $0x58] sm:$0xf]
    %v69 = vld [vmem:[%s1 + $0x5c] sm:$0xf]
    %v70 = vld [vmem:[%s1 + $0x60] sm:$0xf]
    %v71 = vld [vmem:[%s1 + $0x64] sm:$0xf]
    %v72 = vld [vmem:[%s1 + $0x68] sm:$0xf]
    %v73 = vld [vmem:[%s1 + $0x6c] sm:$0xf]
    %v74 = vld [vmem:[%s1 + $0x70] sm:$0xf]
    %v75 = vld [vmem:[%s1 + $0x74] sm:$0xf]
    %v76 = vld [vmem:[%s1 + $0x78] sm:$0xf]
    %v77 = vld [vmem:[%s1 + $0x7c] sm:$0xf]
    %v78 = vld [vmem:[%s2] sm:$0x1]
    %v80 = vlaneseq
    %v81 = vshrl.u32 %v80, 7
    %v82 = vsub.s32 0, %v81
    %v83 = vrot.slane %v78, %v82
    %v117 = vunpack.c.l.b16 %v46
    %v118 = vunpack.c.l.b16 %v47
    %v119 = vunpack.c.l.b16 %v48
    %v120 = vunpack.c.l.b16 %v49
    %v121 = vunpack.c.l.b16 %v50
    %v122 = vunpack.c.l.b16 %v51
    %v123 = vunpack.c.l.b16 %v52
    %v124 = vunpack.c.l.b16 %v53
    %v125 = vunpack.c.l.b16 %v54
    %v126 = vunpack.c.l.b16 %v55
    %v127 = vunpack.c.l.b16 %v56
    %v128 = vunpack.c.l.b16 %v57
    %v129 = vunpack.c.l.b16 %v58
    %v130 = vunpack.c.l.b16 %v59
    %v131 = vunpack.c.l.b16 %v60
    %v132 = vunpack.c.l.b16 %v61
    %v133 = vunpack.c.l.b16 %v62
    %v134 = vunpack.c.l.b16 %v63
    %v135 = vunpack.c.l.b16 %v64
    %v136 = vunpack.c.l.b16 %v65
    %v137 = vunpack.c.l.b16 %v66
    %v138 = vunpack.c.l.b16 %v67
    %v139 = vunpack.c.l.b16 %v68
    %v140 = vunpack.c.l.b16 %v69
    %v141 = vunpack.c.l.b16 %v70
    %v142 = vunpack.c.l.b16 %v71
    %v143 = vunpack.c.l.b16 %v72
    %v144 = vunpack.c.l.b16 %v73
    %v145 = vunpack.c.l.b16 %v74
    %v146 = vunpack.c.l.b16 %v75
    %v147 = vunpack.c.l.b16 %v76
    %v148 = vunpack.c.l.b16 %v77
    %v149 = vpack.c.b16 %v118, %v117
    %v150 = vpack.c.b16 %v120, %v119
    %v151 = vpack.c.b16 %v122, %v121
    %v152 = vpack.c.b16 %v124, %v123
    %v153 = vpack.c.b16 %v126, %v125
    %v154 = vpack.c.b16 %v128, %v127
    %v155 = vpack.c.b16 %v130, %v129
    %v156 = vpack.c.b16 %v132, %v131
    %v157 = vpack.c.b16 %v134, %v133
    %v158 = vpack.c.b16 %v136, %v135
    %v159 = vpack.c.b16 %v138, %v137
    %v160 = vpack.c.b16 %v140, %v139
    %v161 = vpack.c.b16 %v142, %v141
    %v162 = vpack.c.b16 %v144, %v143
    %v163 = vpack.c.b16 %v146, %v145
    %v164 = vpack.c.b16 %v148, %v147
    %181 = vmatprep.subr.bf16.mxu0 0
    %182 = vmatpush1.bf16.msra.mxu0 %v149
    %183 = vmatprep.subr.bf16.mxu0 0
    %184 = vmatpush1.bf16.msra.mxu0 %v150
    %185 = vmatprep.subr.bf16.mxu0 0
    %186 = vmatpush1.bf16.msra.mxu0 %v151
    %187 = vmatprep.subr.bf16.mxu0 0
    %188 = vmatpush1.bf16.msra.mxu0 %v152
    %189 = vmatprep.subr.bf16.mxu0 0
    %190 = vmatpush1.bf16.msra.mxu0 %v153
    %191 = vmatprep.subr.bf16.mxu0 0
    %192 = vmatpush1.bf16.msra.mxu0 %v154
    %193 = vmatprep.subr.bf16.mxu0 0
    %194 = vmatpush1.bf16.msra.mxu0 %v155
    %195 = vmatprep.subr.bf16.mxu0 0
    %196 = vmatpush1.bf16.msra.mxu0 %v156
    %197 = vmatprep.subr.bf16.mxu0 0
    %198 = vmatpush1.bf16.msra.mxu0 %v157
    %199 = vmatprep.subr.bf16.mxu0 0
    %200 = vmatpush1.bf16.msra.mxu0 %v158
    %201 = vmatprep.subr.bf16.mxu0 0
    %202 = vmatpush1.bf16.msra.mxu0 %v159
    %203 = vmatprep.subr.bf16.mxu0 0
    %204 = vmatpush1.bf16.msra.mxu0 %v160
    %205 = vmatprep.subr.bf16.mxu0 0
    %206 = vmatpush1.bf16.msra.mxu0 %v161
    %207 = vmatprep.subr.bf16.mxu0 0
    %208 = vmatpush1.bf16.msra.mxu0 %v162
    %209 = vmatprep.subr.bf16.mxu0 0
    %210 = vmatpush1.bf16.msra.mxu0 %v163
    %211 = vmatprep.subr.bf16.mxu0 0
    %212 = vmatpush1.bf16.msra.mxu0 %v164
    %213 = vmatprep.mubr.bf16.mxu0 %v39
    %214 = vmatmul.mubr.bf16.gmra.mrb[0].mxu0 %v38
    %v215 = vpop.f32.mrb[0].mxu0
    %v216 = vadd.f32 %v83, %v215
    %v217 = vpop.f32.mrb[0].mxu0
    %v218 = vpop.f32.mrb[0].mxu0
    %v219 = vadd.f32 %v83, %v218
    %v220 = vpop.f32.mrb[0].mxu0
    %221 = vmatprep.mubr.bf16.mxu0 %v41
    %222 = vmatmul.mubr.bf16.gmra.mrb[0].mxu0 %v40
    %v223 = vpop.f32.mrb[0].mxu0
    %v224 = vadd.f32 %v83, %v223
    %v225 = vpop.f32.mrb[0].mxu0
    %v226 = vpop.f32.mrb[0].mxu0
    %v227 = vadd.f32 %v83, %v226
    %v228 = vpop.f32.mrb[0].mxu0
    %229 = vmatprep.mubr.bf16.mxu0 %v43
    %230 = vmatmul.mubr.bf16.gmra.mrb[0].mxu0 %v42
    %v231 = vpop.f32.mrb[0].mxu0
    %v232 = vadd.f32 %v83, %v231
    %v233 = vpop.f32.mrb[0].mxu0
    %v234 = vpop.f32.mrb[0].mxu0
    %v235 = vadd.f32 %v83, %v234
    %v236 = vpop.f32.mrb[0].mxu0
    %237 = vmatprep.mubr.bf16.mxu0 %v45
    %238 = vmatmul.mubr.bf16.gmra.mrb[0].mxu0 %v44
    %v239 = vpop.f32.mrb[0].mxu0
    %v240 = vadd.f32 %v83, %v239
    %v241 = vpop.f32.mrb[0].mxu0
    %v242 = vpop.f32.mrb[0].mxu0
    %v243 = vadd.f32 %v83, %v242
    %v244 = vpop.f32.mrb[0].mxu0
    %245 = vdwg.mxu0
    %v246 = vadd.f32 %v216, %v219
    %v247 = vadd.f32 %v246, %v224
    %v248 = vadd.f32 %v247, %v227
    %v249 = vadd.f32 %v248, %v232
    %v250 = vadd.f32 %v249, %v235
    %v251 = vadd.f32 %v250, %v240
    %v252 = vadd.f32 %v251, %v243
    %v253 = vrot.slane %v252, 4
    %v254 = vadd.f32 %v252, %v253
    %v255 = vrot.slane %v254, 2
    %v256 = vadd.f32 %v254, %v255
    %v257 = vrot.slane %v256, 1
    %v258 = vadd.f32 %v256, %v257
    %v259 = vmul.f32 %v258, 0.015625
    %v260 = vsub.f32 %v216, %v259
    %v261 = vsub.f32 %v219, %v259
    %v262 = vsub.f32 %v224, %v259
    %v263 = vsub.f32 %v227, %v259
    %v264 = vsub.f32 %v232, %v259
    %v265 = vsub.f32 %v235, %v259
    %v266 = vsub.f32 %v240, %v259
    %v267 = vsub.f32 %v243, %v259
    %v268 = vmul.f32 %v260, %v260
    %v269 = vmul.f32 %v261, %v261
    %v270 = vmul.f32 %v262, %v262
    %v271 = vmul.f32 %v263, %v263
    %v272 = vmul.f32 %v264, %v264
    %v273 = vmul.f32 %v265, %v265
    %v274 = vmul.f32 %v266, %v266
    %v275 = vmul.f32 %v267, %v267
    %v276 = vadd.f32 %v268, %v269
    %v277 = vadd.f32 %v276, %v270
    %v278 = vadd.f32 %v277, %v271
    %v279 = vadd.f32 %v278, %v272
    %v280 = vadd.f32 %v279, %v273
    %v281 = vadd.f32 %v280, %v274
    %v282 = vadd.f32 %v281, %v275
    %v283 = vrot.slane %v282, 4
    %v284 = vadd.f32 %v282, %v283
    %v285 = vrot.slane %v284, 2
    %v286 = vadd.f32 %v284, %v285
    %v287 = vrot.slane %v286, 1
    %v288 = vadd.f32 %v286, %v287
    %v289 = vmul.f32 %v288, 0.015625
    %v290 = vadd.f32 %v289, 1e-05
    %v291 = vrsqrt.pop %v290
    %v292 = vld [vmem:[%s3] sm:$0x1]
    %v293 = vmul.f32 %v292, %v291
    %v295 = vlaneseq
    %v296 = vshrl.u32 %v295, 7
    %v297 = vsub.s32 0, %v296
    %v298 = vrot.slane %v293, %v297
    %v300 = vmul.f32 %v260, %v298
    %v301 = vmul.f32 %v261, %v298
    %v302 = vmul.f32 %v262, %v298
    %v303 = vmul.f32 %v263, %v298
    %v304 = vmul.f32 %v264, %v298
    %v305 = vmul.f32 %v265, %v298
    %v306 = vmul.f32 %v266, %v298
    %v307 = vmul.f32 %v267, %v298
    %v308 = vld [vmem:[%s4] sm:$0x1]
    %v310 = vlaneseq
    %v311 = vshrl.u32 %v310, 7
    %v312 = vsub.s32 0, %v311
    %v313 = vrot.slane %v308, %v312
    %v315 = vadd.f32 %v300, %v313
    %v316 = vadd.f32 %v301, %v313
    %v317 = vadd.f32 %v302, %v313
    %v318 = vadd.f32 %v303, %v313
    %v319 = vadd.f32 %v304, %v313
    %v320 = vadd.f32 %v305, %v313
    %v321 = vadd.f32 %v306, %v313
    %v322 = vadd.f32 %v307, %v313
    %323 = vst [vmem:[#allocation2] sm:$0xff] %v315
    %324 = vst [vmem:[#allocation2 + $0x8] sm:$0xff] %v316
    %325 = vst [vmem:[#allocation2 + $0x10] sm:$0xff] %v317
    %326 = vst [vmem:[#allocation2 + $0x18] sm:$0xff] %v318
    %327 = vst [vmem:[#allocation2 + $0x20] sm:$0xff] %v319
    %328 = vst [vmem:[#allocation2 + $0x28] sm:$0xff] %v320
    %329 = vst [vmem:[#allocation2 + $0x30] sm:$0xff] %v321
    %330 = vst [vmem:[#allocation2 + $0x38] sm:$0xff] %v322
    // Predicated region
    $region22: #{linear_bn.1} parent=1 // pred_check
      _
    $region23: #{linear_bn.1} parent=1 // pred_check_branch
      %332 = sbr.rel (0) target = $region25
    $region24: #{linear_bn.1} parent=1 // pred_region
      %s334 = ssub.s32 1024, 1024
      %335 = vsyncadd [#allocation3], %s334
      %s336 = sshll.u32 [#allocation2], 4
      %s337 = int_to_ptr.vmem [resolvable:$true] %s336
      %342 = dma.vmem_to_hbm [thread:$0]  %s337, 1024, %s5, [#allocation3], 128, 128, 8
    $region25: #{linear_bn.1} parent=1 // pred_fallthru
      _
    // Predicated region
    $region26: #{linear_bn.1} parent=1 // pred_check
      _
    $region27: #{linear_bn.1} parent=1 // pred_check_branch
      %344 = sbr.rel (0) target = $region29
    $region28: #{linear_bn.1} parent=1 // pred_region
      %345 = dma.done [#allocation3], 1024
    $region29: #{linear_bn.1} parent=1 // pred_fallthru
      _
    %346 = vsyncpa [#allocation3], 1

</llo_original>
